<compile_context>
chip_gen: v7x
topology: tpu7x:2x2x1
jax: 0.10.0
libtpu: 0.0.40
codegen_flags: <defaults>
</compile_context>

<pallas_src>
import jax
import jax.numpy as jnp
from jax.experimental import pallas as pl
from jax.experimental.pallas import tpu as pltpu


_MIN_ROWS = 8            # sublane-tile minimum for 32-bit rows (table packed to u32)
_MAX_ROWS = 64           # DMA descriptors kept in flight per grid step
_TARGET_INFLIGHT = 4 << 20  # ~4 MiB outstanding targets v7x's ~3.2 TB/s HBM


def _select_rows_per_step(batch, row_bytes):
    """Pick rows gathered per grid step (multiple of _MIN_ROWS)."""
    rows = _TARGET_INFLIGHT // max(1, row_bytes)
    rows = max(_MIN_ROWS, min(_MAX_ROWS, (rows // _MIN_ROWS) * _MIN_ROWS))
    # Don't make the block larger than the (minimally padded) batch.
    rows = min(rows, _MIN_ROWS * pl.cdiv(batch, _MIN_ROWS))
    # Keep >= 2 grid steps when the batch permits, so v7x's two TensorCores
    # (grid axis marked "parallel") both issue their own DMA stream.
    while rows > _MIN_ROWS and pl.cdiv(batch, rows) < 2:
        rows -= _MIN_ROWS
    return rows


def fixed_vocab_embed_pallas(ids, table):
    """Pallas DMA-gather embedding lookup.

    ids:   (batch,) integer array
    table: (vocab, embed_dim) array
    returns (batch, embed_dim) array with table's dtype (bit-exact rows).
    """
    vocab, embed_dim = table.shape
    batch = ids.shape[0]
    orig_dtype = table.dtype
    itemsize = jnp.dtype(orig_dtype).itemsize

    # TODO(synk): PyTorch nn.Embedding raises IndexError on out-of-range ids;
    # here we clamp instead (keeps the HBM DMA in bounds).
    ids = jnp.clip(ids.astype(jnp.int32), 0, vocab - 1)

    # Sub-32-bit tables: pack lanes into uint32 so each gathered row is a
    # plain 32-bit row (8-sublane tile minimum, no packed-sublane DMA scatter).
    packed = False
    if itemsize < 4:
        lanes = 4 // itemsize
        if embed_dim % lanes != 0:
            # TODO(synk): odd narrow rows have no clean 32-bit packing; fall
            # back to a plain XLA gather for this corner case.
            return table[ids]
        table = jax.lax.bitcast_convert_type(
            table.reshape(vocab, embed_dim // lanes, lanes), jnp.uint32)
        packed = True
    gather_dim = table.shape[1]          # 32-bit words per row
    row_bytes = gather_dim * 4

    rows_per_step = _select_rows_per_step(batch, row_bytes)
    padded_batch = rows_per_step * pl.cdiv(batch, rows_per_step)
    num_steps = padded_batch // rows_per_step
    tail = batch % rows_per_step         # valid rows in the last step (0 => all)

    if padded_batch != batch:
        ids = jnp.concatenate(
            [ids, jnp.zeros((padded_batch - batch,), jnp.int32)])

    def kernel(ids_ref, table_ref, out_ref, copy_sems):
        # ids_ref:   (padded_batch,) int32 in SMEM (scalar prefetch)
        # table_ref: (vocab, gather_dim) in HBM (memory_space=pl.ANY)
        # out_ref:   (rows_per_step, gather_dim) VMEM output block
        # copy_sems: (rows_per_step,) DMA semaphores
        step = pl.program_id(0)
        base = pl.multiple_of(step * rows_per_step, rows_per_step)
        not_last = step < pl.num_programs(0) - 1

        def issue(r):
            row = ids_ref[base + r]
            pltpu.make_async_copy(
                table_ref.at[row], out_ref.at[r], copy_sems.at[r]).start()

        def drain(r):
            # Only the descriptor shape matters for .wait().
            pltpu.make_async_copy(
                table_ref.at[0], out_ref.at[r], copy_sems.at[r]).wait()

        always_valid = tail if tail else rows_per_step

        # Issue all row gathers first so rows_per_step DMAs are in flight...
        for r in range(always_valid):
            issue(r)
        if tail:
            @pl.when(not_last)                     # skip padded tail rows
            def _issue_tail():
                for r in range(tail, rows_per_step):
                    issue(r)

        # ...then wait (guards match the issue guards exactly).
        for r in range(always_valid):
            drain(r)
        if tail:
            @pl.when(not_last)
            def _drain_tail():
                for r in range(tail, rows_per_step):
                    drain(r)

    out = pl.pallas_call(
        kernel,
        out_shape=jax.ShapeDtypeStruct((padded_batch, gather_dim), table.dtype),
        grid_spec=pltpu.PrefetchScalarGridSpec(
            num_scalar_prefetch=1,                 # ids -> SMEM
            grid=(num_steps,),
            in_specs=[pl.BlockSpec(memory_space=pl.ANY)],   # table stays in HBM
            out_specs=pl.BlockSpec(
                (rows_per_step, gather_dim), lambda i, ids_ref: (i, 0)),
            scratch_shapes=[pltpu.SemaphoreType.DMA((rows_per_step,))],
        ),
        compiler_params=pltpu.CompilerParams(
            dimension_semantics=("parallel",),     # shard batch tiles over TCs
        ),
        cost_estimate=pl.CostEstimate(             # memory-bound hint for XLA
            flops=0, transcendentals=0,
            bytes_accessed=2 * batch * embed_dim * itemsize),
    )(ids, table)

    if padded_batch != batch:
        out = out[:batch]                          # drop (skipped) padded rows
    if packed:
        out = jax.lax.bitcast_convert_type(out, orig_dtype)
        out = out.reshape(batch, embed_dim)
    return out


def fixed_vocab_embed(ids, table):
    """Dispatcher: tiny rows / tiny batches are cheaper as a plain XLA gather
    (per-DMA-descriptor overhead dominates); otherwise Pallas DMA gather."""
    vocab, embed_dim = table.shape
    row_bytes = embed_dim * jnp.dtype(table.dtype).itemsize
    batch = ids.shape[0]
    if row_bytes < 1024 or batch < 2 * _MIN_ROWS:
        # TODO(synk): a VMEM-resident-table gather kernel would beat XLA here
        # when the whole table fits in ~8-16 MiB of VMEM.
        return table[jnp.clip(ids.astype(jnp.int32), 0, vocab - 1)]
    return fixed_vocab_embed_pallas(ids, table)


if __name__ == "__main__":
    key = jax.random.PRNGKey(0)
    k_table, k_ids = jax.random.split(key)

    # Small shapes consistent with FixedVocabEmbedder(vocab_size, embed_dim).
    vocab_size, embed_dim, batch = 16, 128, 8
    # nn.Embedding default init: weight ~ N(0, 1)
    table = jax.random.normal(k_table, (vocab_size, embed_dim), dtype=jnp.float32)
    # "list[int] of length batch"
    ids = jax.random.randint(k_ids, (batch,), 0, vocab_size, dtype=jnp.int32)

    out = jax.block_until_ready(fixed_vocab_embed_pallas(ids, table))
    ref = table[ids]
    assert out.shape == (batch, embed_dim)
    assert out.dtype == jnp.float32
    assert jnp.array_equal(out, ref), "mismatch vs reference gather"

    # Ragged batch + multi-step grid: exercises the pl.when tail guard.
    k_t2, k_i2 = jax.random.split(k_ids)
    table2 = jax.random.normal(k_t2, (512, 256), dtype=jnp.float32)
    ids2 = jax.random.randint(k_i2, (13,), 0, 512, dtype=jnp.int32)
    out2 = jax.block_until_ready(fixed_vocab_embed_pallas(ids2, table2))
    assert out2.shape == (13, 256)
    assert jnp.array_equal(out2, table2[ids2]), "mismatch (ragged case)"

    # Larger batch: exercises the 64-rows-per-step path with a ragged tail.
    k_t3, k_i3 = jax.random.split(k_i2)
    table3 = jax.random.normal(k_t3, (256, 512), dtype=jnp.float32)
    ids3 = jax.random.randint(k_i3, (200,), 0, 256, dtype=jnp.int32)
    out3 = jax.block_until_ready(fixed_vocab_embed_pallas(ids3, table3))
    assert out3.shape == (200, 512)
    assert jnp.array_equal(out3, table3[ids3]), "mismatch (large-batch case)"

    # Dispatcher path (tiny rows -> XLA gather).
    out4 = jax.block_until_ready(fixed_vocab_embed(ids, table))
    assert jnp.array_equal(out4, ref), "mismatch (dispatcher case)"

    print("KERNEL_OK")
</pallas_src>

<mosaic_0001>
module attributes {stable_mosaic.version = 11 : i64} {
  func.func @kernel(%arg0: i32, %arg1: memref<8xi32, #tpu.memory_space<smem>>, %arg2: memref<16x128xf32, #tpu.memory_space<any>>, %arg3: memref<8x128xf32, #tpu.memory_space<vmem>>, %arg4: memref<8x!tpu.dma_semaphore, #tpu.memory_space<semaphore_mem>>) attributes {dimension_semantics = [#tpu.dimension_semantics<parallel>], iteration_bounds = array<i64: 1>, scalar_prefetch = 1 : i64, scratch_operands = 1 : i64, tpu.core_type = #tpu.core_type<tc>, window_params = [{}, {transform_indices = @transform_1, window_bounds = array<i64: 8, 128>}]} {
    %c8_i32 = arith.constant 8 : i32
    %0 = arith.muli %arg0, %c8_i32 : i32
    %1 = tpu.assume_multiple %0, 8 : i32
    %c0_i32 = arith.constant 0 : i32
    %2 = arith.addi %1, %c0_i32 : i32
    %3 = arith.index_cast %2 : i32 to index
    %4 = memref.load %arg1[%3] : memref<8xi32, #tpu.memory_space<smem>>
    %c0_i32_0 = arith.constant 0 : i32
    %c0_i32_1 = arith.constant 0 : i32
    %c0_i32_2 = arith.constant 0 : i32
    %5 = tpu.memref_slice %arg2[%4, %c0_i32_2] : memref<16x128xf32, #tpu.memory_space<any>> -> memref<1x128xf32, #tpu.memory_space<any>>
    %6 = tpu.memref_squeeze %5 : memref<1x128xf32, #tpu.memory_space<any>> -> memref<128xf32, #tpu.memory_space<any>>
    %c0_i32_3 = arith.constant 0 : i32
    %7 = tpu.memref_slice %arg3[%c0_i32_0, %c0_i32_3] : memref<8x128xf32, #tpu.memory_space<vmem>> -> memref<1x128xf32, #tpu.memory_space<vmem>>
    %8 = tpu.memref_squeeze %7 : memref<1x128xf32, #tpu.memory_space<vmem>> -> memref<128xf32, #tpu.memory_space<vmem>>
    %9 = tpu.memref_slice %arg4[%c0_i32_1] : memref<8x!tpu.dma_semaphore, #tpu.memory_space<semaphore_mem>> -> memref<1x!tpu.dma_semaphore, #tpu.memory_space<semaphore_mem>>
    %10 = tpu.memref_squeeze %9 : memref<1x!tpu.dma_semaphore, #tpu.memory_space<semaphore_mem>> -> memref<!tpu.dma_semaphore, #tpu.memory_space<semaphore_mem>>
    tpu.enqueue_dma source(%6 : memref<128xf32, #tpu.memory_space<any>>) target(%8 : memref<128xf32, #tpu.memory_space<vmem>>) target_semaphore(%10 : memref<!tpu.dma_semaphore, #tpu.memory_space<semaphore_mem>>)
    %c1_i32 = arith.constant 1 : i32
    %11 = arith.addi %1, %c1_i32 : i32
    %12 = arith.index_cast %11 : i32 to index
    %13 = memref.load %arg1[%12] : memref<8xi32, #tpu.memory_space<smem>>
    %c1_i32_4 = arith.constant 1 : i32
    %c1_i32_5 = arith.constant 1 : i32
    %c0_i32_6 = arith.constant 0 : i32
    %14 = tpu.memref_slice %arg2[%13, %c0_i32_6] : memref<16x128xf32, #tpu.memory_space<any>> -> memref<1x128xf32, #tpu.memory_space<any>>
    %15 = tpu.memref_squeeze %14 : memref<1x128xf32, #tpu.memory_space<any>> -> memref<128xf32, #tpu.memory_space<any>>
    %c0_i32_7 = arith.constant 0 : i32
    %16 = tpu.memref_slice %arg3[%c1_i32_4, %c0_i32_7] : memref<8x128xf32, #tpu.memory_space<vmem>> -> memref<1x128xf32, #tpu.memory_space<vmem>>
    %17 = tpu.memref_squeeze %16 : memref<1x128xf32, #tpu.memory_space<vmem>> -> memref<128xf32, #tpu.memory_space<vmem>>
    %18 = tpu.memref_slice %arg4[%c1_i32_5] : memref<8x!tpu.dma_semaphore, #tpu.memory_space<semaphore_mem>> -> memref<1x!tpu.dma_semaphore, #tpu.memory_space<semaphore_mem>>
    %19 = tpu.memref_squeeze %18 : memref<1x!tpu.dma_semaphore, #tpu.memory_space<semaphore_mem>> -> memref<!tpu.dma_semaphore, #tpu.memory_space<semaphore_mem>>
    tpu.enqueue_dma source(%15 : memref<128xf32, #tpu.memory_space<any>>) target(%17 : memref<128xf32, #tpu.memory_space<vmem>>) target_semaphore(%19 : memref<!tpu.dma_semaphore, #tpu.memory_space<semaphore_mem>>)
    %c2_i32 = arith.constant 2 : i32
    %20 = arith.addi %1, %c2_i32 : i32
    %21 = arith.index_cast %20 : i32 to index
    %22 = memref.load %arg1[%21] : memref<8xi32, #tpu.memory_space<smem>>
    %c2_i32_8 = arith.constant 2 : i32
    %c2_i32_9 = arith.constant 2 : i32
    %c0_i32_10 = arith.constant 0 : i32
    %23 = tpu.memref_slice %arg2[%22, %c0_i32_10] : memref<16x128xf32, #tpu.memory_space<any>> -> memref<1x128xf32, #tpu.memory_space<any>>
    %24 = tpu.memref_squeeze %23 : memref<1x128xf32, #tpu.memory_space<any>> -> memref<128xf32, #tpu.memory_space<any>>
    %c0_i32_11 = arith.constant 0 : i32
    %25 = tpu.memref_slice %arg3[%c2_i32_8, %c0_i32_11] : memref<8x128xf32, #tpu.memory_space<vmem>> -> memref<1x128xf32, #tpu.memory_space<vmem>>
    %26 = tpu.memref_squeeze %25 : memref<1x128xf32, #tpu.memory_space<vmem>> -> memref<128xf32, #tpu.memory_space<vmem>>
    %27 = tpu.memref_slice %arg4[%c2_i32_9] : memref<8x!tpu.dma_semaphore, #tpu.memory_space<semaphore_mem>> -> memref<1x!tpu.dma_semaphore, #tpu.memory_space<semaphore_mem>>
    %28 = tpu.memref_squeeze %27 : memref<1x!tpu.dma_semaphore, #tpu.memory_space<semaphore_mem>> -> memref<!tpu.dma_semaphore, #tpu.memory_space<semaphore_mem>>
    tpu.enqueue_dma source(%24 : memref<128xf32, #tpu.memory_space<any>>) target(%26 : memref<128xf32, #tpu.memory_space<vmem>>) target_semaphore(%28 : memref<!tpu.dma_semaphore, #tpu.memory_space<semaphore_mem>>)
    %c3_i32 = arith.constant 3 : i32
    %29 = arith.addi %1, %c3_i32 : i32
    %30 = arith.index_cast %29 : i32 to index
    %31 = memref.load %arg1[%30] : memref<8xi32, #tpu.memory_space<smem>>
    %c3_i32_12 = arith.constant 3 : i32
    %c3_i32_13 = arith.constant 3 : i32
    %c0_i32_14 = arith.constant 0 : i32
    %32 = tpu.memref_slice %arg2[%31, %c0_i32_14] : memref<16x128xf32, #tpu.memory_space<any>> -> memref<1x128xf32, #tpu.memory_space<any>>
    %33 = tpu.memref_squeeze %32 : memref<1x128xf32, #tpu.memory_space<any>> -> memref<128xf32, #tpu.memory_space<any>>
    %c0_i32_15 = arith.constant 0 : i32
    %34 = tpu.memref_slice %arg3[%c3_i32_12, %c0_i32_15] : memref<8x128xf32, #tpu.memory_space<vmem>> -> memref<1x128xf32, #tpu.memory_space<vmem>>
    %35 = tpu.memref_squeeze %34 : memref<1x128xf32, #tpu.memory_space<vmem>> -> memref<128xf32, #tpu.memory_space<vmem>>
    %36 = tpu.memref_slice %arg4[%c3_i32_13] : memref<8x!tpu.dma_semaphore, #tpu.memory_space<semaphore_mem>> -> memref<1x!tpu.dma_semaphore, #tpu.memory_space<semaphore_mem>>
    %37 = tpu.memref_squeeze %36 : memref<1x!tpu.dma_semaphore, #tpu.memory_space<semaphore_mem>> -> memref<!tpu.dma_semaphore, #tpu.memory_space<semaphore_mem>>
    tpu.enqueue_dma source(%33 : memref<128xf32, #tpu.memory_space<any>>) target(%35 : memref<128xf32, #tpu.memory_space<vmem>>) target_semaphore(%37 : memref<!tpu.dma_semaphore, #tpu.memory_space<semaphore_mem>>)
    %c4_i32 = arith.constant 4 : i32
    %38 = arith.addi %1, %c4_i32 : i32
    %39 = arith.index_cast %38 : i32 to index
    %40 = memref.load %arg1[%39] : memref<8xi32, #tpu.memory_space<smem>>
    %c4_i32_16 = arith.constant 4 : i32
    %c4_i32_17 = arith.constant 4 : i32
    %c0_i32_18 = arith.constant 0 : i32
    %41 = tpu.memref_slice %arg2[%40, %c0_i32_18] : memref<16x128xf32, #tpu.memory_space<any>> -> memref<1x128xf32, #tpu.memory_space<any>>
    %42 = tpu.memref_squeeze %41 : memref<1x128xf32, #tpu.memory_space<any>> -> memref<128xf32, #tpu.memory_space<any>>
    %c0_i32_19 = arith.constant 0 : i32
    %43 = tpu.memref_slice %arg3[%c4_i32_16, %c0_i32_19] : memref<8x128xf32, #tpu.memory_space<vmem>> -> memref<1x128xf32, #tpu.memory_space<vmem>>
    %44 = tpu.memref_squeeze %43 : memref<1x128xf32, #tpu.memory_space<vmem>> -> memref<128xf32, #tpu.memory_space<vmem>>
    %45 = tpu.memref_slice %arg4[%c4_i32_17] : memref<8x!tpu.dma_semaphore, #tpu.memory_space<semaphore_mem>> -> memref<1x!tpu.dma_semaphore, #tpu.memory_space<semaphore_mem>>
    %46 = tpu.memref_squeeze %45 : memref<1x!tpu.dma_semaphore, #tpu.memory_space<semaphore_mem>> -> memref<!tpu.dma_semaphore, #tpu.memory_space<semaphore_mem>>
    tpu.enqueue_dma source(%42 : memref<128xf32, #tpu.memory_space<any>>) target(%44 : memref<128xf32, #tpu.memory_space<vmem>>) target_semaphore(%46 : memref<!tpu.dma_semaphore, #tpu.memory_space<semaphore_mem>>)
    %c5_i32 = arith.constant 5 : i32
    %47 = arith.addi %1, %c5_i32 : i32
    %48 = arith.index_cast %47 : i32 to index
    %49 = memref.load %arg1[%48] : memref<8xi32, #tpu.memory_space<smem>>
    %c5_i32_20 = arith.constant 5 : i32
    %c5_i32_21 = arith.constant 5 : i32
    %c0_i32_22 = arith.constant 0 : i32
    %50 = tpu.memref_slice %arg2[%49, %c0_i32_22] : memref<16x128xf32, #tpu.memory_space<any>> -> memref<1x128xf32, #tpu.memory_space<any>>
    %51 = tpu.memref_squeeze %50 : memref<1x128xf32, #tpu.memory_space<any>> -> memref<128xf32, #tpu.memory_space<any>>
    %c0_i32_23 = arith.constant 0 : i32
    %52 = tpu.memref_slice %arg3[%c5_i32_20, %c0_i32_23] : memref<8x128xf32, #tpu.memory_space<vmem>> -> memref<1x128xf32, #tpu.memory_space<vmem>>
    %53 = tpu.memref_squeeze %52 : memref<1x128xf32, #tpu.memory_space<vmem>> -> memref<128xf32, #tpu.memory_space<vmem>>
    %54 = tpu.memref_slice %arg4[%c5_i32_21] : memref<8x!tpu.dma_semaphore, #tpu.memory_space<semaphore_mem>> -> memref<1x!tpu.dma_semaphore, #tpu.memory_space<semaphore_mem>>
    %55 = tpu.memref_squeeze %54 : memref<1x!tpu.dma_semaphore, #tpu.memory_space<semaphore_mem>> -> memref<!tpu.dma_semaphore, #tpu.memory_space<semaphore_mem>>
    tpu.enqueue_dma source(%51 : memref<128xf32, #tpu.memory_space<any>>) target(%53 : memref<128xf32, #tpu.memory_space<vmem>>) target_semaphore(%55 : memref<!tpu.dma_semaphore, #tpu.memory_space<semaphore_mem>>)
    %c6_i32 = arith.constant 6 : i32
    %56 = arith.addi %1, %c6_i32 : i32
    %57 = arith.index_cast %56 : i32 to index
    %58 = memref.load %arg1[%57] : memref<8xi32, #tpu.memory_space<smem>>
    %c6_i32_24 = arith.constant 6 : i32
    %c6_i32_25 = arith.constant 6 : i32
    %c0_i32_26 = arith.constant 0 : i32
    %59 = tpu.memref_slice %arg2[%58, %c0_i32_26] : memref<16x128xf32, #tpu.memory_space<any>> -> memref<1x128xf32, #tpu.memory_space<any>>
    %60 = tpu.memref_squeeze %59 : memref<1x128xf32, #tpu.memory_space<any>> -> memref<128xf32, #tpu.memory_space<any>>
    %c0_i32_27 = arith.constant 0 : i32
    %61 = tpu.memref_slice %arg3[%c6_i32_24, %c0_i32_27] : memref<8x128xf32, #tpu.memory_space<vmem>> -> memref<1x128xf32, #tpu.memory_space<vmem>>
    %62 = tpu.memref_squeeze %61 : memref<1x128xf32, #tpu.memory_space<vmem>> -> memref<128xf32, #tpu.memory_space<vmem>>
    %63 = tpu.memref_slice %arg4[%c6_i32_25] : memref<8x!tpu.dma_semaphore, #tpu.memory_space<semaphore_mem>> -> memref<1x!tpu.dma_semaphore, #tpu.memory_space<semaphore_mem>>
    %64 = tpu.memref_squeeze %63 : memref<1x!tpu.dma_semaphore, #tpu.memory_space<semaphore_mem>> -> memref<!tpu.dma_semaphore, #tpu.memory_space<semaphore_mem>>
    tpu.enqueue_dma source(%60 : memref<128xf32, #tpu.memory_space<any>>) target(%62 : memref<128xf32, #tpu.memory_space<vmem>>) target_semaphore(%64 : memref<!tpu.dma_semaphore, #tpu.memory_space<semaphore_mem>>)
    %c7_i32 = arith.constant 7 : i32
    %65 = arith.addi %1, %c7_i32 : i32
    %66 = arith.index_cast %65 : i32 to index
    %67 = memref.load %arg1[%66] : memref<8xi32, #tpu.memory_space<smem>>
    %c7_i32_28 = arith.constant 7 : i32
    %c7_i32_29 = arith.constant 7 : i32
    %c0_i32_30 = arith.constant 0 : i32
    %68 = tpu.memref_slice %arg2[%67, %c0_i32_30] : memref<16x128xf32, #tpu.memory_space<any>> -> memref<1x128xf32, #tpu.memory_space<any>>
    %69 = tpu.memref_squeeze %68 : memref<1x128xf32, #tpu.memory_space<any>> -> memref<128xf32, #tpu.memory_space<any>>
    %c0_i32_31 = arith.constant 0 : i32
    %70 = tpu.memref_slice %arg3[%c7_i32_28, %c0_i32_31] : memref<8x128xf32, #tpu.memory_space<vmem>> -> memref<1x128xf32, #tpu.memory_space<vmem>>
    %71 = tpu.memref_squeeze %70 : memref<1x128xf32, #tpu.memory_space<vmem>> -> memref<128xf32, #tpu.memory_space<vmem>>
    %72 = tpu.memref_slice %arg4[%c7_i32_29] : memref<8x!tpu.dma_semaphore, #tpu.memory_space<semaphore_mem>> -> memref<1x!tpu.dma_semaphore, #tpu.memory_space<semaphore_mem>>
    %73 = tpu.memref_squeeze %72 : memref<1x!tpu.dma_semaphore, #tpu.memory_space<semaphore_mem>> -> memref<!tpu.dma_semaphore, #tpu.memory_space<semaphore_mem>>
    tpu.enqueue_dma source(%69 : memref<128xf32, #tpu.memory_space<any>>) target(%71 : memref<128xf32, #tpu.memory_space<vmem>>) target_semaphore(%73 : memref<!tpu.dma_semaphore, #tpu.memory_space<semaphore_mem>>)
    %c0_i32_32 = arith.constant 0 : i32
    %c0_i32_33 = arith.constant 0 : i32
    %c0_i32_34 = arith.constant 0 : i32
    %c0_i32_35 = arith.constant 0 : i32
    %74 = tpu.memref_slice %arg2[%c0_i32_32, %c0_i32_35] : memref<16x128xf32, #tpu.memory_space<any>> -> memref<1x128xf32, #tpu.memory_space<any>>
    %75 = tpu.memref_squeeze %74 : memref<1x128xf32, #tpu.memory_space<any>> -> memref<128xf32, #tpu.memory_space<any>>
    %c0_i32_36 = arith.constant 0 : i32
    %76 = tpu.memref_slice %arg3[%c0_i32_33, %c0_i32_36] : memref<8x128xf32, #tpu.memory_space<vmem>> -> memref<1x128xf32, #tpu.memory_space<vmem>>
    %77 = tpu.memref_squeeze %76 : memref<1x128xf32, #tpu.memory_space<vmem>> -> memref<128xf32, #tpu.memory_space<vmem>>
    %78 = tpu.memref_slice %arg4[%c0_i32_34] : memref<8x!tpu.dma_semaphore, #tpu.memory_space<semaphore_mem>> -> memref<1x!tpu.dma_semaphore, #tpu.memory_space<semaphore_mem>>
    %79 = tpu.memref_squeeze %78 : memref<1x!tpu.dma_semaphore, #tpu.memory_space<semaphore_mem>> -> memref<!tpu.dma_semaphore, #tpu.memory_space<semaphore_mem>>
    tpu.wait_dma2 semaphore(%79 : memref<!tpu.dma_semaphore, #tpu.memory_space<semaphore_mem>>) src(%75 : memref<128xf32, #tpu.memory_space<any>>) dst(%77 : memref<128xf32, #tpu.memory_space<vmem>>)
    %c0_i32_37 = arith.constant 0 : i32
    %c1_i32_38 = arith.constant 1 : i32
    %c1_i32_39 = arith.constant 1 : i32
    %c0_i32_40 = arith.constant 0 : i32
    %80 = tpu.memref_slice %arg2[%c0_i32_37, %c0_i32_40] : memref<16x128xf32, #tpu.memory_space<any>> -> memref<1x128xf32, #tpu.memory_space<any>>
    %81 = tpu.memref_squeeze %80 : memref<1x128xf32, #tpu.memory_space<any>> -> memref<128xf32, #tpu.memory_space<any>>
    %c0_i32_41 = arith.constant 0 : i32
    %82 = tpu.memref_slice %arg3[%c1_i32_38, %c0_i32_41] : memref<8x128xf32, #tpu.memory_space<vmem>> -> memref<1x128xf32, #tpu.memory_space<vmem>>
    %83 = tpu.memref_squeeze %82 : memref<1x128xf32, #tpu.memory_space<vmem>> -> memref<128xf32, #tpu.memory_space<vmem>>
    %84 = tpu.memref_slice %arg4[%c1_i32_39] : memref<8x!tpu.dma_semaphore, #tpu.memory_space<semaphore_mem>> -> memref<1x!tpu.dma_semaphore, #tpu.memory_space<semaphore_mem>>
    %85 = tpu.memref_squeeze %84 : memref<1x!tpu.dma_semaphore, #tpu.memory_space<semaphore_mem>> -> memref<!tpu.dma_semaphore, #tpu.memory_space<semaphore_mem>>
    tpu.wait_dma2 semaphore(%85 : memref<!tpu.dma_semaphore, #tpu.memory_space<semaphore_mem>>) src(%81 : memref<128xf32, #tpu.memory_space<any>>) dst(%83 : memref<128xf32, #tpu.memory_space<vmem>>)
    %c0_i32_42 = arith.constant 0 : i32
    %c2_i32_43 = arith.constant 2 : i32
    %c2_i32_44 = arith.constant 2 : i32
    %c0_i32_45 = arith.constant 0 : i32
    %86 = tpu.memref_slice %arg2[%c0_i32_42, %c0_i32_45] : memref<16x128xf32, #tpu.memory_space<any>> -> memref<1x128xf32, #tpu.memory_space<any>>
    %87 = tpu.memref_squeeze %86 : memref<1x128xf32, #tpu.memory_space<any>> -> memref<128xf32, #tpu.memory_space<any>>
    %c0_i32_46 = arith.constant 0 : i32
    %88 = tpu.memref_slice %arg3[%c2_i32_43, %c0_i32_46] : memref<8x128xf32, #tpu.memory_space<vmem>> -> memref<1x128xf32, #tpu.memory_space<vmem>>
    %89 = tpu.memref_squeeze %88 : memref<1x128xf32, #tpu.memory_space<vmem>> -> memref<128xf32, #tpu.memory_space<vmem>>
    %90 = tpu.memref_slice %arg4[%c2_i32_44] : memref<8x!tpu.dma_semaphore, #tpu.memory_space<semaphore_mem>> -> memref<1x!tpu.dma_semaphore, #tpu.memory_space<semaphore_mem>>
    %91 = tpu.memref_squeeze %90 : memref<1x!tpu.dma_semaphore, #tpu.memory_space<semaphore_mem>> -> memref<!tpu.dma_semaphore, #tpu.memory_space<semaphore_mem>>
    tpu.wait_dma2 semaphore(%91 : memref<!tpu.dma_semaphore, #tpu.memory_space<semaphore_mem>>) src(%87 : memref<128xf32, #tpu.memory_space<any>>) dst(%89 : memref<128xf32, #tpu.memory_space<vmem>>)
    %c0_i32_47 = arith.constant 0 : i32
    %c3_i32_48 = arith.constant 3 : i32
    %c3_i32_49 = arith.constant 3 : i32
    %c0_i32_50 = arith.constant 0 : i32
    %92 = tpu.memref_slice %arg2[%c0_i32_47, %c0_i32_50] : memref<16x128xf32, #tpu.memory_space<any>> -> memref<1x128xf32, #tpu.memory_space<any>>
    %93 = tpu.memref_squeeze %92 : memref<1x128xf32, #tpu.memory_space<any>> -> memref<128xf32, #tpu.memory_space<any>>
    %c0_i32_51 = arith.constant 0 : i32
    %94 = tpu.memref_slice %arg3[%c3_i32_48, %c0_i32_51] : memref<8x128xf32, #tpu.memory_space<vmem>> -> memref<1x128xf32, #tpu.memory_space<vmem>>
    %95 = tpu.memref_squeeze %94 : memref<1x128xf32, #tpu.memory_space<vmem>> -> memref<128xf32, #tpu.memory_space<vmem>>
    %96 = tpu.memref_slice %arg4[%c3_i32_49] : memref<8x!tpu.dma_semaphore, #tpu.memory_space<semaphore_mem>> -> memref<1x!tpu.dma_semaphore, #tpu.memory_space<semaphore_mem>>
    %97 = tpu.memref_squeeze %96 : memref<1x!tpu.dma_semaphore, #tpu.memory_space<semaphore_mem>> -> memref<!tpu.dma_semaphore, #tpu.memory_space<semaphore_mem>>
    tpu.wait_dma2 semaphore(%97 : memref<!tpu.dma_semaphore, #tpu.memory_space<semaphore_mem>>) src(%93 : memref<128xf32, #tpu.memory_space<any>>) dst(%95 : memref<128xf32, #tpu.memory_space<vmem>>)
    %c0_i32_52 = arith.constant 0 : i32
    %c4_i32_53 = arith.constant 4 : i32
    %c4_i32_54 = arith.constant 4 : i32
    %c0_i32_55 = arith.constant 0 : i32
    %98 = tpu.memref_slice %arg2[%c0_i32_52, %c0_i32_55] : memref<16x128xf32, #tpu.memory_space<any>> -> memref<1x128xf32, #tpu.memory_space<any>>
    %99 = tpu.memref_squeeze %98 : memref<1x128xf32, #tpu.memory_space<any>> -> memref<128xf32, #tpu.memory_space<any>>
    %c0_i32_56 = arith.constant 0 : i32
    %100 = tpu.memref_slice %arg3[%c4_i32_53, %c0_i32_56] : memref<8x128xf32, #tpu.memory_space<vmem>> -> memref<1x128xf32, #tpu.memory_space<vmem>>
    %101 = tpu.memref_squeeze %100 : memref<1x128xf32, #tpu.memory_space<vmem>> -> memref<128xf32, #tpu.memory_space<vmem>>
    %102 = tpu.memref_slice %arg4[%c4_i32_54] : memref<8x!tpu.dma_semaphore, #tpu.memory_space<semaphore_mem>> -> memref<1x!tpu.dma_semaphore, #tpu.memory_space<semaphore_mem>>
    %103 = tpu.memref_squeeze %102 : memref<1x!tpu.dma_semaphore, #tpu.memory_space<semaphore_mem>> -> memref<!tpu.dma_semaphore, #tpu.memory_space<semaphore_mem>>
    tpu.wait_dma2 semaphore(%103 : memref<!tpu.dma_semaphore, #tpu.memory_space<semaphore_mem>>) src(%99 : memref<128xf32, #tpu.memory_space<any>>) dst(%101 : memref<128xf32, #tpu.memory_space<vmem>>)
    %c0_i32_57 = arith.constant 0 : i32
    %c5_i32_58 = arith.constant 5 : i32
    %c5_i32_59 = arith.constant 5 : i32
    %c0_i32_60 = arith.constant 0 : i32
    %104 = tpu.memref_slice %arg2[%c0_i32_57, %c0_i32_60] : memref<16x128xf32, #tpu.memory_space<any>> -> memref<1x128xf32, #tpu.memory_space<any>>
    %105 = tpu.memref_squeeze %104 : memref<1x128xf32, #tpu.memory_space<any>> -> memref<128xf32, #tpu.memory_space<any>>
    %c0_i32_61 = arith.constant 0 : i32
    %106 = tpu.memref_slice %arg3[%c5_i32_58, %c0_i32_61] : memref<8x128xf32, #tpu.memory_space<vmem>> -> memref<1x128xf32, #tpu.memory_space<vmem>>
    %107 = tpu.memref_squeeze %106 : memref<1x128xf32, #tpu.memory_space<vmem>> -> memref<128xf32, #tpu.memory_space<vmem>>
    %108 = tpu.memref_slice %arg4[%c5_i32_59] : memref<8x!tpu.dma_semaphore, #tpu.memory_space<semaphore_mem>> -> memref<1x!tpu.dma_semaphore, #tpu.memory_space<semaphore_mem>>
    %109 = tpu.memref_squeeze %108 : memref<1x!tpu.dma_semaphore, #tpu.memory_space<semaphore_mem>> -> memref<!tpu.dma_semaphore, #tpu.memory_space<semaphore_mem>>
    tpu.wait_dma2 semaphore(%109 : memref<!tpu.dma_semaphore, #tpu.memory_space<semaphore_mem>>) src(%105 : memref<128xf32, #tpu.memory_space<any>>) dst(%107 : memref<128xf32, #tpu.memory_space<vmem>>)
    %c0_i32_62 = arith.constant 0 : i32
    %c6_i32_63 = arith.constant 6 : i32
    %c6_i32_64 = arith.constant 6 : i32
    %c0_i32_65 = arith.constant 0 : i32
    %110 = tpu.memref_slice %arg2[%c0_i32_62, %c0_i32_65] : memref<16x128xf32, #tpu.memory_space<any>> -> memref<1x128xf32, #tpu.memory_space<any>>
    %111 = tpu.memref_squeeze %110 : memref<1x128xf32, #tpu.memory_space<any>> -> memref<128xf32, #tpu.memory_space<any>>
    %c0_i32_66 = arith.constant 0 : i32
    %112 = tpu.memref_slice %arg3[%c6_i32_63, %c0_i32_66] : memref<8x128xf32, #tpu.memory_space<vmem>> -> memref<1x128xf32, #tpu.memory_space<vmem>>
    %113 = tpu.memref_squeeze %112 : memref<1x128xf32, #tpu.memory_space<vmem>> -> memref<128xf32, #tpu.memory_space<vmem>>
    %114 = tpu.memref_slice %arg4[%c6_i32_64] : memref<8x!tpu.dma_semaphore, #tpu.memory_space<semaphore_mem>> -> memref<1x!tpu.dma_semaphore, #tpu.memory_space<semaphore_mem>>
    %115 = tpu.memref_squeeze %114 : memref<1x!tpu.dma_semaphore, #tpu.memory_space<semaphore_mem>> -> memref<!tpu.dma_semaphore, #tpu.memory_space<semaphore_mem>>
    tpu.wait_dma2 semaphore(%115 : memref<!tpu.dma_semaphore, #tpu.memory_space<semaphore_mem>>) src(%111 : memref<128xf32, #tpu.memory_space<any>>) dst(%113 : memref<128xf32, #tpu.memory_space<vmem>>)
    %c0_i32_67 = arith.constant 0 : i32
    %c7_i32_68 = arith.constant 7 : i32
    %c7_i32_69 = arith.constant 7 : i32
    %c0_i32_70 = arith.constant 0 : i32
    %116 = tpu.memref_slice %arg2[%c0_i32_67, %c0_i32_70] : memref<16x128xf32, #tpu.memory_space<any>> -> memref<1x128xf32, #tpu.memory_space<any>>
    %117 = tpu.memref_squeeze %116 : memref<1x128xf32, #tpu.memory_space<any>> -> memref<128xf32, #tpu.memory_space<any>>
    %c0_i32_71 = arith.constant 0 : i32
    %118 = tpu.memref_slice %arg3[%c7_i32_68, %c0_i32_71] : memref<8x128xf32, #tpu.memory_space<vmem>> -> memref<1x128xf32, #tpu.memory_space<vmem>>
    %119 = tpu.memref_squeeze %118 : memref<1x128xf32, #tpu.memory_space<vmem>> -> memref<128xf32, #tpu.memory_space<vmem>>
    %120 = tpu.memref_slice %arg4[%c7_i32_69] : memref<8x!tpu.dma_semaphore, #tpu.memory_space<semaphore_mem>> -> memref<1x!tpu.dma_semaphore, #tpu.memory_space<semaphore_mem>>
    %121 = tpu.memref_squeeze %120 : memref<1x!tpu.dma_semaphore, #tpu.memory_space<semaphore_mem>> -> memref<!tpu.dma_semaphore, #tpu.memory_space<semaphore_mem>>
    tpu.wait_dma2 semaphore(%121 : memref<!tpu.dma_semaphore, #tpu.memory_space<semaphore_mem>>) src(%117 : memref<128xf32, #tpu.memory_space<any>>) dst(%119 : memref<128xf32, #tpu.memory_space<vmem>>)
    return
  }
  func.func @transform_1(%arg0: i32, %arg1: memref<8xi32, #tpu.memory_space<smem>>) -> (i32, i32) {
    %c0_i32 = arith.constant 0 : i32
    %c0_i32_0 = arith.constant 0 : i32
    return %arg0, %c0_i32 : i32, i32
  }
}

</mosaic_0001>

<llo_original>
// kernel: tpu_custom_call.1
$region0: #{tpu_custom_call.1}
  #allocation0 [shape = 'u32[]', space=smem, size = 0x4, offset = 0x4, fixed_abs, tag = 'smem constant byte address 0x4 - core index']
  #allocation1 [shape = 'u32[144,128]{1,0:T(1,128)}', space=vmem, size = 0x12000, scoped, tag = 'internal scratch']
  #allocation2 [shape = 's32[8]{0}', space=sflag, size = 0x20, scoped, tag = 'scratch operand']
  #allocation3 [shape = 's32[1]{0}', space=sflag, size = 0x4, scoped, tag = 'scoped memory for tpu_custom_call.1']
  #allocation4 [shape = 'u8[512]{0}', space=smem, size = 0x200, scoped, tag = 'prefetched SMEM operand 0']
  #allocation7 [shape = 's32[]', space=sflag, size = 0x4, offset = 0, fixed_abs, tag = 'sflag constant byte address 0x0 - dummy sync flag']
  #allocation8 [shape = 's32[]', space=sflag, size = 0x4, offset = 0, fixed_abs, tag = 'sflag constant byte address 0x0 - dummy sync flag']
  #allocation9 [shape = 'u32[]', space=smem, size = 0x4, offset = 0x44, fixed_abs, tag = 'smem constant byte address 0x44 - assertion arg 0']
  #allocation10 [shape = 'u32[]', space=smem, size = 0x4, offset = 0x48, fixed_abs, tag = 'smem constant byte address 0x48 - assertion arg 1']
  #allocation11 [shape = 's32[]', space=sflag, size = 0x4, offset = 0, fixed_abs, tag = 'sflag constant byte address 0x0 - dummy sync flag']
  #allocation12 [shape = 's32[]', space=sflag, size = 0x4, offset = 0, fixed_abs, tag = 'sflag constant byte address 0x0 - dummy sync flag']
  #allocation13 [shape = 's32[]', space=sflag, size = 0x4, offset = 0, fixed_abs, tag = 'sflag constant byte address 0x0 - dummy sync flag']
  #allocation14 [shape = 's32[]', space=sflag, size = 0x4, offset = 0, fixed_abs, tag = 'sflag constant byte address 0x0 - dummy sync flag']
  #allocation15 [shape = 's32[]', space=sflag, size = 0x4, offset = 0, fixed_abs, tag = 'sflag constant byte address 0x0 - dummy sync flag']
  #allocation16 [shape = 's32[]', space=sflag, size = 0x4, offset = 0, fixed_abs, tag = 'sflag constant byte address 0x0 - dummy sync flag']
  #allocation17 [shape = 's32[]', space=sflag, size = 0x4, offset = 0, fixed_abs, tag = 'sflag constant byte address 0x0 - dummy sync flag']
  #allocation18 [shape = 's32[]', space=sflag, size = 0x4, offset = 0, fixed_abs, tag = 'sflag constant byte address 0x0 - dummy sync flag']
  #allocation19 [shape = 's32[]', space=sflag, size = 0x4, offset = 0, fixed_abs, tag = 'sflag constant byte address 0x0 - dummy sync flag']
  #allocation20 [shape = 's32[]', space=sflag, size = 0x4, offset = 0, fixed_abs, tag = 'sflag constant byte address 0x0 - dummy sync flag']
  #allocation21 [shape = 's32[]', space=sflag, size = 0x4, offset = 0, fixed_abs, tag = 'sflag constant byte address 0x0 - dummy sync flag']
  #allocation22 [shape = 's32[]', space=sflag, size = 0x4, offset = 0, fixed_abs, tag = 'sflag constant byte address 0x0 - dummy sync flag']
  #allocation23 [shape = 's32[]', space=sflag, size = 0x4, offset = 0, fixed_abs, tag = 'sflag constant byte address 0x0 - dummy sync flag']
  #allocation24 [shape = 's32[]', space=sflag, size = 0x4, offset = 0, fixed_abs, tag = 'sflag constant byte address 0x0 - dummy sync flag']
  %s0 = inlined_call_operand.hbm [shape: s32[8], index: 0, kind: input, shape index: {}]
  %s1 = inlined_call_operand.hbm [shape: f32[16,128], index: 1, kind: input, shape index: {}]
  %s2 = inlined_call_operand.hbm [shape: f32[8,128], index: 2, kind: output, shape index: {}]
  %s3 = sld [smem:[#allocation0]]
  $region42: #{tpu_custom_call.1} parent=0
    _
  %s5 = ssub.s32 1, %s3
  %s6 = scalar_select 0, %s5, %s3
  %8 = dma.hbm_to_smem %s0, 16, [#allocation4], [#allocation3]
  %9 = dma.done [#allocation3], 16
  %10 = sfence
  $region1: #{tpu_custom_call.1} parent=0
    #allocation5 [shape = 'u8[4096]{0}', space=vmem, size = 0x1000, scoped, tag = 'output window, operand 0, single buffered']
    #allocation6 [shape = 's32[1]{0}', space=sflag, size = 0x4, scoped, tag = 'scoped memory for tpu_custom_call.1']
    %11 = vsyncpa [#allocation6], 0
    %s12 = smul.u32 0, 8
    %s13 = sld [smem:[#allocation4 + %s12]]
    %s14 = smul.addr %s13, 16
    %s15 = scalar_lea.hbm %s1, %s14
    // Predicated region
    $region2: #{tpu_custom_call.1} parent=1 // pred_check
      _
    $region3: #{tpu_custom_call.1} parent=1 // pred_check_branch
      %17 = sbr.rel target = $region5
    $region4: #{tpu_custom_call.1} parent=1 // pred_region
      %18 = sst [smem:[#allocation9]] [#allocation8]
      %19 = sst [smem:[#allocation10]] [#allocation7]
    $region5: #{tpu_custom_call.1} parent=1 // pred_fallthru
      _
    %21 = shalt.err (0)
    %s23 = sshll.u32 [#allocation5], 4
    %s24 = int_to_ptr.vmem [resolvable:$true] %s23
    %26 = dma.hbm_to_vmem [thread:$0]  %s15, 16, %s24, [#allocation2]
    %s27 = sadd.s32 %s12, 1
    %s28 = sld [smem:[#allocation4 + %s27]]
    %s29 = smul.addr %s28, 16
    %s30 = scalar_lea.hbm %s1, %s29
    %s31 = scalar_lea.vmem [#allocation5], 1
    %s32 = scalar_lea.sflag [#allocation2], 1
    // Predicated region
    $region6: #{tpu_custom_call.1} parent=1 // pred_check
      _
    $region7: #{tpu_custom_call.1} parent=1 // pred_check_branch
      %34 = sbr.rel target = $region9
    $region8: #{tpu_custom_call.1} parent=1 // pred_region
      %35 = sst [smem:[#allocation9]] [#allocation12]
      %36 = sst [smem:[#allocation10]] [#allocation11]
    $region9: #{tpu_custom_call.1} parent=1 // pred_fallthru
      _
    %38 = shalt.err (0)
    %s40 = sshll.u32 %s31, 4
    %s41 = int_to_ptr.vmem [resolvable:$true] %s40
    %43 = dma.hbm_to_vmem [thread:$0]  %s30, 16, %s41, %s32
    %s44 = sadd.s32 %s12, 2
    %s45 = sld [smem:[#allocation4 + %s44]]
    %s46 = smul.addr %s45, 16
    %s47 = scalar_lea.hbm %s1, %s46
    %s48 = scalar_lea.vmem [#allocation5], 2
    %s49 = scalar_lea.sflag [#allocation2], 2
    // Predicated region
    $region10: #{tpu_custom_call.1} parent=1 // pred_check
      _
    $region11: #{tpu_custom_call.1} parent=1 // pred_check_branch
      %51 = sbr.rel target = $region13
    $region12: #{tpu_custom_call.1} parent=1 // pred_region
      %52 = sst [smem:[#allocation9]] [#allocation14]
      %53 = sst [smem:[#allocation10]] [#allocation13]
    $region13: #{tpu_custom_call.1} parent=1 // pred_fallthru
      _
    %55 = shalt.err (0)
    %s57 = sshll.u32 %s48, 4
    %s58 = int_to_ptr.vmem [resolvable:$true] %s57
    %60 = dma.hbm_to_vmem [thread:$0]  %s47, 16, %s58, %s49
    %s61 = sadd.s32 %s12, 3
    %s62 = sld [smem:[#allocation4 + %s61]]
    %s63 = smul.addr %s62, 16
    %s64 = scalar_lea.hbm %s1, %s63
    %s65 = scalar_lea.vmem [#allocation5], 3
    %s66 = scalar_lea.sflag [#allocation2], 3
    // Predicated region
    $region14: #{tpu_custom_call.1} parent=1 // pred_check
      _
    $region15: #{tpu_custom_call.1} parent=1 // pred_check_branch
      %68 = sbr.rel target = $region17
    $region16: #{tpu_custom_call.1} parent=1 // pred_region
      %69 = sst [smem:[#allocation9]] [#allocation16]
      %70 = sst [smem:[#allocation10]] [#allocation15]
    $region17: #{tpu_custom_call.1} parent=1 // pred_fallthru
      _
    %72 = shalt.err (0)
    %s74 = sshll.u32 %s65, 4
    %s75 = int_to_ptr.vmem [resolvable:$true] %s74
    %77 = dma.hbm_to_vmem [thread:$0]  %s64, 16, %s75, %s66
    %s78 = sadd.s32 %s12, 4
    %s79 = sld [smem:[#allocation4 + %s78]]
    %s80 = smul.addr %s79, 16
    %s81 = scalar_lea.hbm %s1, %s80
    %s82 = scalar_lea.vmem [#allocation5], 4
    %s83 = scalar_lea.sflag [#allocation2], 4
    // Predicated region
    $region18: #{tpu_custom_call.1} parent=1 // pred_check
      _
    $region19: #{tpu_custom_call.1} parent=1 // pred_check_branch
      %85 = sbr.rel target = $region21
    $region20: #{tpu_custom_call.1} parent=1 // pred_region
      %86 = sst [smem:[#allocation9]] [#allocation18]
      %87 = sst [smem:[#allocation10]] [#allocation17]
    $region21: #{tpu_custom_call.1} parent=1 // pred_fallthru
      _
    %89 = shalt.err (0)
    %s91 = sshll.u32 %s82, 4
    %s92 = int_to_ptr.vmem [resolvable:$true] %s91
    %94 = dma.hbm_to_vmem [thread:$0]  %s81, 16, %s92, %s83
    %s95 = sadd.s32 %s12, 5
    %s96 = sld [smem:[#allocation4 + %s95]]
    %s97 = smul.addr %s96, 16
    %s98 = scalar_lea.hbm %s1, %s97
    %s99 = scalar_lea.vmem [#allocation5], 5
    %s100 = scalar_lea.sflag [#allocation2], 5
    // Predicated region
    $region22: #{tpu_custom_call.1} parent=1 // pred_check
      _
    $region23: #{tpu_custom_call.1} parent=1 // pred_check_branch
      %102 = sbr.rel target = $region25
    $region24: #{tpu_custom_call.1} parent=1 // pred_region
      %103 = sst [smem:[#allocation9]] [#allocation20]
      %104 = sst [smem:[#allocation10]] [#allocation19]
    $region25: #{tpu_custom_call.1} parent=1 // pred_fallthru
      _
    %106 = shalt.err (0)
    %s108 = sshll.u32 %s99, 4
    %s109 = int_to_ptr.vmem [resolvable:$true] %s108
    %111 = dma.hbm_to_vmem [thread:$0]  %s98, 16, %s109, %s100
    %s112 = sadd.s32 %s12, 6
    %s113 = sld [smem:[#allocation4 + %s112]]
    %s114 = smul.addr %s113, 16
    %s115 = scalar_lea.hbm %s1, %s114
    %s116 = scalar_lea.vmem [#allocation5], 6
    %s117 = scalar_lea.sflag [#allocation2], 6
    // Predicated region
    $region26: #{tpu_custom_call.1} parent=1 // pred_check
      _
    $region27: #{tpu_custom_call.1} parent=1 // pred_check_branch
      %119 = sbr.rel target = $region29
    $region28: #{tpu_custom_call.1} parent=1 // pred_region
      %120 = sst [smem:[#allocation9]] [#allocation22]
      %121 = sst [smem:[#allocation10]] [#allocation21]
    $region29: #{tpu_custom_call.1} parent=1 // pred_fallthru
      _
    %123 = shalt.err (0)
    %s125 = sshll.u32 %s116, 4
    %s126 = int_to_ptr.vmem [resolvable:$true] %s125
    %128 = dma.hbm_to_vmem [thread:$0]  %s115, 16, %s126, %s117
    %s129 = sadd.s32 %s12, 7
    %s130 = sld [smem:[#allocation4 + %s129]]
    %s131 = smul.addr %s130, 16
    %s132 = scalar_lea.hbm %s1, %s131
    %s133 = scalar_lea.vmem [#allocation5], 7
    %s134 = scalar_lea.sflag [#allocation2], 7
    // Predicated region
    $region30: #{tpu_custom_call.1} parent=1 // pred_check
      _
    $region31: #{tpu_custom_call.1} parent=1 // pred_check_branch
      %136 = sbr.rel target = $region33
    $region32: #{tpu_custom_call.1} parent=1 // pred_region
      %137 = sst [smem:[#allocation9]] [#allocation24]
      %138 = sst [smem:[#allocation10]] [#allocation23]
    $region33: #{tpu_custom_call.1} parent=1 // pred_fallthru
      _
    %140 = shalt.err (0)
    %s142 = sshll.u32 %s133, 4
    %s143 = int_to_ptr.vmem [resolvable:$true] %s142
    %145 = dma.hbm_to_vmem [thread:$0]  %s132, 16, %s143, %s134
    %147 = dma.done [#allocation2], 16
    %149 = dma.done %s32, 16
    %151 = dma.done %s49, 16
    %153 = dma.done %s66, 16
    %155 = dma.done %s83, 16
    %157 = dma.done %s100, 16
    %159 = dma.done %s117, 16
    %161 = dma.done %s134, 16
    // Predicated region
    $region34: #{tpu_custom_call.1} parent=1 // pred_check
      _
    $region35: #{tpu_custom_call.1} parent=1 // pred_check_branch
      %163 = sbr.rel (0) target = $region37
    $region36: #{tpu_custom_call.1} parent=1 // pred_region
      %s165 = ssub.s32 128, 128
      %166 = vsyncadd [#allocation6], %s165
      %s168 = sshll.u32 [#allocation5], 4
      %s169 = int_to_ptr.vmem [resolvable:$true] %s168
      %171 = dma.vmem_to_hbm [thread:$0]  %s169, 128, %s2, [#allocation6]
    $region37: #{tpu_custom_call.1} parent=1 // pred_fallthru
      _
    // Predicated region
    $region38: #{tpu_custom_call.1} parent=1 // pred_check
      _
    $region39: #{tpu_custom_call.1} parent=1 // pred_check_branch
      %173 = sbr.rel (0) target = $region41
    $region40: #{tpu_custom_call.1} parent=1 // pred_region
      %174 = dma.done [#allocation6], 128
    $region41: #{tpu_custom_call.1} parent=1 // pred_fallthru
      _
    %175 = vsyncpa [#allocation6], 1
  %176 = vsyncmov [#allocation2]
  %s177 = vpop.sfrf %176
  %p178 = scmp.eq.s32.totalorder %s177, 0
  %p179 = pneg %p178
  %181 = shalt.err (%p179)
  %s182 = scalar_lea.sflag [#allocation2], 1
  %183 = vsyncmov %s182
  %s184 = vpop.sfrf %183
  %p185 = scmp.eq.s32.totalorder %s184, 0
  %p186 = pneg %p185
  %188 = shalt.err (%p186)
  %s189 = scalar_lea.sflag [#allocation2], 2
  %190 = vsyncmov %s189
  %s191 = vpop.sfrf %190
  %p192 = scmp.eq.s32.totalorder %s191, 0
  %p193 = pneg %p192
  %195 = shalt.err (%p193)
  %s196 = scalar_lea.sflag [#allocation2], 3
  %197 = vsyncmov %s196
  %s198 = vpop.sfrf %197
  %p199 = scmp.eq.s32.totalorder %s198, 0
  %p200 = pneg %p199
  %202 = shalt.err (%p200)
  %s203 = scalar_lea.sflag [#allocation2], 4
  %204 = vsyncmov %s203
  %s205 = vpop.sfrf %204
  %p206 = scmp.eq.s32.totalorder %s205, 0
  %p207 = pneg %p206
  %209 = shalt.err (%p207)
  %s210 = scalar_lea.sflag [#allocation2], 5
  %211 = vsyncmov %s210
  %s212 = vpop.sfrf %211
  %p213 = scmp.eq.s32.totalorder %s212, 0
  %p214 = pneg %p213
  %216 = shalt.err (%p214)
  %s217 = scalar_lea.sflag [#allocation2], 6
  %218 = vsyncmov %s217
  %s219 = vpop.sfrf %218
  %p220 = scmp.eq.s32.totalorder %s219, 0
  %p221 = pneg %p220
  %223 = shalt.err (%p221)
  %s224 = scalar_lea.sflag [#allocation2], 7
  %225 = vsyncmov %s224
  %s226 = vpop.sfrf %225
  %p227 = scmp.eq.s32.totalorder %s226, 0
  %p228 = pneg %p227
  %230 = shalt.err (%p228)

</llo_original>
